<compile_context>
chip_gen: v7x
topology: tpu7x:2x2x1
jax: 0.10.0
libtpu: 0.0.40
codegen_flags: <defaults>
</compile_context>

<pallas_src>
import functools

import jax
import jax.numpy as jnp
from jax.experimental import pallas as pl
from jax.experimental.pallas import tpu as pltpu

EPS = 1e-5
TARGET_BLOCK_BYTES = 2 * 1024 * 1024          # per-input-block VMEM budget
VMEM_LIMIT_BYTES = 32 * 1024 * 1024           # safe on v5e/v6e/v7x


# ----------------------------------------------------------------------------
# Kernels
# ----------------------------------------------------------------------------
def _bn_stats_kernel(x_ref, sum_ref, ssq_ref, *, n_rows, tile_rows):
    """Streaming sum / sum-of-squares over row tiles (accumulator outputs)."""
    i = pl.program_id(0)

    @pl.when(i == 0)
    def _():
        sum_ref[...] = jnp.zeros_like(sum_ref)
        ssq_ref[...] = jnp.zeros_like(ssq_ref)

    x = x_ref[...].astype(jnp.float32)
    # Mask rows of a partial last tile so padded garbage never enters the stats.
    row = jax.lax.broadcasted_iota(jnp.int32, x.shape, 0) + i * tile_rows
    x = jnp.where(row < n_rows, x, 0.0)
    sum_ref[...] += jnp.sum(x, axis=0, keepdims=True)
    ssq_ref[...] += jnp.sum(x * x, axis=0, keepdims=True)


def _affine_apply_kernel(x_ref, scale_ref, shift_ref, o_ref):
    """y = x * scale + shift   (pure elementwise, lane-dense when packed)."""
    x = x_ref[...].astype(jnp.float32)
    o_ref[...] = (x * scale_ref[...] + shift_ref[...]).astype(o_ref.dtype)


def _instancenorm_kernel(x_ref, g_ref, b_ref, o_ref):
    """x_ref: (Bt, S, D); normalize over S per (b, d), biased var, affine."""
    x = x_ref[...].astype(jnp.float32)
    mean = jnp.mean(x, axis=1, keepdims=True)                  # (Bt, 1, D)
    var = jnp.mean((x - mean) ** 2, axis=1, keepdims=True)     # biased
    inv = jax.lax.rsqrt(var + EPS)
    o_ref[...] = ((x - mean) * (inv * g_ref[...]) + b_ref[...]).astype(o_ref.dtype)


def _layernorm_kernel(x_ref, o_ref):
    """x_ref: (Bt, S, D); per-sample normalization over (S, D), unbiased var."""
    x = x_ref[...].astype(jnp.float32)
    n = x.shape[1] * x.shape[2]
    mean = jnp.mean(x, axis=(1, 2), keepdims=True)                       # (Bt,1,1)
    var = jnp.sum((x - mean) ** 2, axis=(1, 2), keepdims=True) / (n - 1)  # unbiased
    o_ref[...] = ((x - mean) * jax.lax.rsqrt(var + EPS)).astype(o_ref.dtype)


# ----------------------------------------------------------------------------
# Tiling helpers (all static / trace-time)
# ----------------------------------------------------------------------------
def _row_tile(n_rows, row_bytes):
    """Largest row tile <= TARGET_BLOCK_BYTES, multiple of 8 (or full extent)."""
    t = max(1, TARGET_BLOCK_BYTES // max(1, row_bytes))
    if t >= n_rows:
        return n_rows
    return max(8, (t // 8) * 8)


def _batch_tile(batch, sample_bytes):
    t = max(1, TARGET_BLOCK_BYTES // max(1, sample_bytes))
    return min(t, batch)


# ----------------------------------------------------------------------------
# Wrappers
# ----------------------------------------------------------------------------
@functools.partial(jax.jit, static_argnames=("normalization",))
def normalization_forward(x, gamma, beta, normalization="batch"):
    B, S, D = x.shape

    if normalization == "batch":
        N = B * S
        xf = x.reshape(N, D)

        # Lane packing: put k = 128//D consecutive rows side by side so the
        # last dim is 128 lanes (dense vld/vst instead of masked partial ops).
        if D < 128 and (128 % D == 0) and (N % (128 // D) == 0):
            k = 128 // D
        else:
            k = 1
        Dw = k * D
        Nw = N // k
        xw = xf.reshape(Nw, Dw)

        tm = _row_tile(Nw, Dw * 4)
        grid_rows = pl.cdiv(Nw, tm)

        # ---- pass 1: streaming sum / sum-of-squares (reduction grid axis) ----
        sums, ssqs = pl.pallas_call(
            functools.partial(_bn_stats_kernel, n_rows=Nw, tile_rows=tm),
            out_shape=(
                jax.ShapeDtypeStruct((1, Dw), jnp.float32),
                jax.ShapeDtypeStruct((1, Dw), jnp.float32),
            ),
            grid=(grid_rows,),
            in_specs=[pl.BlockSpec((tm, Dw), lambda i: (i, 0))],
            out_specs=(
                pl.BlockSpec((1, Dw), lambda i: (0, 0)),
                pl.BlockSpec((1, Dw), lambda i: (0, 0)),
            ),
            compiler_params=pltpu.CompilerParams(
                dimension_semantics=("arbitrary",),
                vmem_limit_bytes=VMEM_LIMIT_BYTES,
            ),
        )(xw)

        # ---- tiny finalize in plain JAX (D-length vectors) ----
        s1 = sums.reshape(k, D).sum(axis=0)
        s2 = ssqs.reshape(k, D).sum(axis=0)
        mean = s1 / N
        var = jnp.maximum(s2 / N - mean * mean, 0.0)   # biased variance
        inv = jax.lax.rsqrt(var + EPS)
        scale = gamma.astype(jnp.float32) * inv
        shift = beta.astype(jnp.float32) - mean * scale
        scale_w = jnp.tile(scale, (k,)).reshape(1, Dw)
        shift_w = jnp.tile(shift, (k,)).reshape(1, Dw)

        # ---- pass 2: tiled elementwise apply (parallel grid axis) ----
        out = pl.pallas_call(
            _affine_apply_kernel,
            out_shape=jax.ShapeDtypeStruct((Nw, Dw), x.dtype),
            grid=(grid_rows,),
            in_specs=[
                pl.BlockSpec((tm, Dw), lambda i: (i, 0)),
                pl.BlockSpec((1, Dw), lambda i: (0, 0)),
                pl.BlockSpec((1, Dw), lambda i: (0, 0)),
            ],
            out_specs=pl.BlockSpec((tm, Dw), lambda i: (i, 0)),
            compiler_params=pltpu.CompilerParams(
                dimension_semantics=("parallel",),
                vmem_limit_bytes=VMEM_LIMIT_BYTES,
            ),
        )(xw, scale_w, shift_w)
        return out.reshape(B, S, D)

    elif normalization == "instance":
        bt = _batch_tile(B, S * D * 4)
        grid_b = pl.cdiv(B, bt)
        g = gamma.reshape(1, 1, D).astype(jnp.float32)
        b_ = beta.reshape(1, 1, D).astype(jnp.float32)
        return pl.pallas_call(
            _instancenorm_kernel,
            out_shape=jax.ShapeDtypeStruct((B, S, D), x.dtype),
            grid=(grid_b,),
            in_specs=[
                pl.BlockSpec((bt, S, D), lambda i: (i, 0, 0)),
                pl.BlockSpec((1, 1, D), lambda i: (0, 0, 0)),
                pl.BlockSpec((1, 1, D), lambda i: (0, 0, 0)),
            ],
            out_specs=pl.BlockSpec((bt, S, D), lambda i: (i, 0, 0)),
            compiler_params=pltpu.CompilerParams(
                dimension_semantics=("parallel",),
                vmem_limit_bytes=VMEM_LIMIT_BYTES,
            ),
        )(x, g, b_)

    elif normalization == "layer":
        bt = _batch_tile(B, S * D * 4)
        grid_b = pl.cdiv(B, bt)
        return pl.pallas_call(
            _layernorm_kernel,
            out_shape=jax.ShapeDtypeStruct((B, S, D), x.dtype),
            grid=(grid_b,),
            in_specs=[pl.BlockSpec((bt, S, D), lambda i: (i, 0, 0))],
            out_specs=pl.BlockSpec((bt, S, D), lambda i: (i, 0, 0)),
            compiler_params=pltpu.CompilerParams(
                dimension_semantics=("parallel",),
                vmem_limit_bytes=VMEM_LIMIT_BYTES,
            ),
        )(x)

    else:
        # normalizer is None -> identity
        return x


# ----------------------------------------------------------------------------
# Pure-JAX references (mirror the PyTorch semantics)
# ----------------------------------------------------------------------------
def ref_batch(x, gamma, beta):
    B, S, D = x.shape
    xf = x.reshape(-1, D)
    mean = xf.mean(axis=0)
    var = ((xf - mean) ** 2).mean(axis=0)
    y = (xf - mean) / jnp.sqrt(var + EPS) * gamma + beta
    return y.reshape(B, S, D)


def ref_instance(x, gamma, beta):
    mean = x.mean(axis=1, keepdims=True)
    var = ((x - mean) ** 2).mean(axis=1, keepdims=True)
    return (x - mean) / jnp.sqrt(var + EPS) * gamma.reshape(1, 1, -1) + beta.reshape(1, 1, -1)


def ref_layer(x):
    B, S, D = x.shape
    mean = x.mean(axis=(1, 2), keepdims=True)
    var = ((x - mean) ** 2).sum(axis=(1, 2), keepdims=True) / (S * D - 1)
    return (x - mean) / jnp.sqrt(var + EPS)


# ----------------------------------------------------------------------------
if __name__ == "__main__":
    key = jax.random.PRNGKey(0)
    kx, kg, kb = jax.random.split(key, 3)

    B, S, D = 2, 8, 32          # batch, seq, embed_dim
    x = jax.random.normal(kx, (B, S, D), dtype=jnp.float32)
    gamma = 1.0 + 0.1 * jax.random.normal(kg, (D,), dtype=jnp.float32)
    beta = 0.1 * jax.random.normal(kb, (D,), dtype=jnp.float32)

    out_b = jax.block_until_ready(normalization_forward(x, gamma, beta, "batch"))
    out_i = jax.block_until_ready(normalization_forward(x, gamma, beta, "instance"))
    out_l = jax.block_until_ready(normalization_forward(x, gamma, beta, "layer"))

    ok = True
    ok &= bool(jnp.allclose(out_b, ref_batch(x, gamma, beta), atol=5e-5, rtol=1e-5))
    ok &= bool(jnp.allclose(out_i, ref_instance(x, gamma, beta), atol=5e-5, rtol=1e-5))
    ok &= bool(jnp.allclose(out_l, ref_layer(x), atol=5e-5, rtol=1e-5))

    if not ok:
        max_err = max(
            float(jnp.abs(out_b - ref_batch(x, gamma, beta)).max()),
            float(jnp.abs(out_i - ref_instance(x, gamma, beta)).max()),
            float(jnp.abs(out_l - ref_layer(x)).max()),
        )
        raise SystemExit(f"mismatch, max err {max_err}")

    print("KERNEL_OK")
</pallas_src>

<mosaic_0001>
module attributes {stable_mosaic.version = 11 : i64} {
  func.func @_bn_stats_kernel(%arg0: i32, %arg1: memref<4x128xf32, #tpu.memory_space<vmem>>, %arg2: memref<1x128xf32, #tpu.memory_space<vmem>>, %arg3: memref<1x128xf32, #tpu.memory_space<vmem>>) attributes {dimension_semantics = [#tpu.dimension_semantics<arbitrary>], iteration_bounds = array<i64: 1>, scalar_prefetch = 0 : i64, scratch_operands = 0 : i64, tpu.core_type = #tpu.core_type<tc>, window_params = [{transform_indices = @transform_0, window_bounds = array<i64: 4, 128>}, {pipeline_mode = #tpu.pipeline_mode<synchronous>, transform_indices = @transform_1, window_bounds = array<i64: 1, 128>}, {pipeline_mode = #tpu.pipeline_mode<synchronous>, transform_indices = @transform_2, window_bounds = array<i64: 1, 128>}]} {
    %c0_i32 = arith.constant 0 : i32
    %0 = arith.cmpi eq, %arg0, %c0_i32 : i32
    %1 = arith.extui %0 : i1 to i32
    %c0_i32_0 = arith.constant 0 : i32
    %2 = arith.cmpi ne, %1, %c0_i32_0 : i32
    scf.if %2 {
      %cst_13 = arith.constant 0.000000e+00 : f32
      %23 = vector.broadcast %cst_13 : f32 to vector<1x128xf32>
      %c0_14 = arith.constant 0 : index
      %c0_15 = arith.constant 0 : index
      %24 = vector.load %arg2[%c0_14, %c0_15] : memref<1x128xf32, #tpu.memory_space<vmem>>, vector<1x128xf32>
      tpu.vector_store %arg2[%c0_14, %c0_15], %23 {strides = array<i32>} : memref<1x128xf32, #tpu.memory_space<vmem>>, vector<1x128xf32>,
      %cst_16 = arith.constant 0.000000e+00 : f32
      %25 = vector.broadcast %cst_16 : f32 to vector<1x128xf32>
      %c0_17 = arith.constant 0 : index
      %c0_18 = arith.constant 0 : index
      %26 = vector.load %arg3[%c0_17, %c0_18] : memref<1x128xf32, #tpu.memory_space<vmem>>, vector<1x128xf32>
      tpu.vector_store %arg3[%c0_17, %c0_18], %25 {strides = array<i32>} : memref<1x128xf32, #tpu.memory_space<vmem>>, vector<1x128xf32>,
    } else {
    }
    %c0 = arith.constant 0 : index
    %c0_1 = arith.constant 0 : index
    %3 = vector.load %arg1[%c0, %c0_1] : memref<4x128xf32, #tpu.memory_space<vmem>>, vector<4x128xf32>
    %4 = tpu.iota {dimensions = array<i32: 0>} : vector<4x128xi32>
    %c4_i32 = arith.constant 4 : i32
    %5 = arith.muli %arg0, %c4_i32 : i32
    %6 = vector.broadcast %5 : i32 to vector<4x128xi32>
    %7 = arith.addi %4, %6 : vector<4x128xi32>
    %c4_i32_2 = arith.constant 4 : i32
    %8 = vector.broadcast %c4_i32_2 : i32 to vector<4x128xi32>
    %9 = arith.cmpi slt, %7, %8 : vector<4x128xi32>
    %cst = arith.constant 0.000000e+00 : f32
    %10 = vector.broadcast %cst : f32 to vector<4x128xf32>
    %11 = arith.select %9, %3, %10 : vector<4x128xi1>, vector<4x128xf32>
    %c0_3 = arith.constant 0 : index
    %c0_4 = arith.constant 0 : index
    %12 = vector.load %arg2[%c0_3, %c0_4] : memref<1x128xf32, #tpu.memory_space<vmem>>, vector<1x128xf32>
    %cst_5 = arith.constant dense<0.000000e+00> : vector<128xf32>
    %13 = vector.multi_reduction <add>, %11, %cst_5 [0] : vector<4x128xf32> to vector<128xf32>
    %14 = vector.shape_cast %13 : vector<128xf32> to vector<1x128xf32>
    %15 = arith.addf %12, %14 : vector<1x128xf32>
    %c0_6 = arith.constant 0 : index
    %c0_7 = arith.constant 0 : index
    %16 = vector.load %arg2[%c0_6, %c0_7] : memref<1x128xf32, #tpu.memory_space<vmem>>, vector<1x128xf32>
    tpu.vector_store %arg2[%c0_6, %c0_7], %15 {strides = array<i32>} : memref<1x128xf32, #tpu.memory_space<vmem>>, vector<1x128xf32>,
    %c0_8 = arith.constant 0 : index
    %c0_9 = arith.constant 0 : index
    %17 = vector.load %arg3[%c0_8, %c0_9] : memref<1x128xf32, #tpu.memory_space<vmem>>, vector<1x128xf32>
    %18 = arith.mulf %11, %11 : vector<4x128xf32>
    %cst_10 = arith.constant dense<0.000000e+00> : vector<128xf32>
    %19 = vector.multi_reduction <add>, %18, %cst_10 [0] : vector<4x128xf32> to vector<128xf32>
    %20 = vector.shape_cast %19 : vector<128xf32> to vector<1x128xf32>
    %21 = arith.addf %17, %20 : vector<1x128xf32>
    %c0_11 = arith.constant 0 : index
    %c0_12 = arith.constant 0 : index
    %22 = vector.load %arg3[%c0_11, %c0_12] : memref<1x128xf32, #tpu.memory_space<vmem>>, vector<1x128xf32>
    tpu.vector_store %arg3[%c0_11, %c0_12], %21 {strides = array<i32>} : memref<1x128xf32, #tpu.memory_space<vmem>>, vector<1x128xf32>,
    return
  }
  func.func @transform_0(%arg0: i32) -> (i32, i32) {
    %c0_i32 = arith.constant 0 : i32
    %c0_i32_0 = arith.constant 0 : i32
    return %arg0, %c0_i32 : i32, i32
  }
  func.func @transform_1(%arg0: i32) -> (i32, i32) {
    %c0_i32 = arith.constant 0 : i32
    %c0_i32_0 = arith.constant 0 : i32
    %c0_i32_1 = arith.constant 0 : i32
    return %c0_i32, %c0_i32_0 : i32, i32
  }
  func.func @transform_2(%arg0: i32) -> (i32, i32) {
    %c0_i32 = arith.constant 0 : i32
    %c0_i32_0 = arith.constant 0 : i32
    %c0_i32_1 = arith.constant 0 : i32
    return %c0_i32, %c0_i32_0 : i32, i32
  }
}

module attributes {stable_mosaic.version = 11 : i64} {
  func.func @_affine_apply_kernel(%arg0: i32, %arg1: memref<4x128xf32, #tpu.memory_space<vmem>>, %arg2: memref<1x128xf32, #tpu.memory_space<vmem>>, %arg3: memref<1x128xf32, #tpu.memory_space<vmem>>, %arg4: memref<4x128xf32, #tpu.memory_space<vmem>>) attributes {dimension_semantics = [#tpu.dimension_semantics<parallel>], iteration_bounds = array<i64: 1>, scalar_prefetch = 0 : i64, scratch_operands = 0 : i64, tpu.core_type = #tpu.core_type<tc>, window_params = [{transform_indices = @transform_0, window_bounds = array<i64: 4, 128>}, {pipeline_mode = #tpu.pipeline_mode<synchronous>, transform_indices = @transform_1, window_bounds = array<i64: 1, 128>}, {pipeline_mode = #tpu.pipeline_mode<synchronous>, transform_indices = @transform_2, window_bounds = array<i64: 1, 128>}, {transform_indices = @transform_3, window_bounds = array<i64: 4, 128>}]} {
    %c0 = arith.constant 0 : index
    %c0_0 = arith.constant 0 : index
    %0 = vector.load %arg1[%c0, %c0_0] : memref<4x128xf32, #tpu.memory_space<vmem>>, vector<4x128xf32>
    %c0_1 = arith.constant 0 : index
    %c0_2 = arith.constant 0 : index
    %1 = vector.load %arg2[%c0_1, %c0_2] : memref<1x128xf32, #tpu.memory_space<vmem>>, vector<1x128xf32>
    %2 = vector.broadcast %1 : vector<1x128xf32> to vector<4x128xf32>
    %3 = arith.mulf %0, %2 : vector<4x128xf32>
    %c0_3 = arith.constant 0 : index
    %c0_4 = arith.constant 0 : index
    %4 = vector.load %arg3[%c0_3, %c0_4] : memref<1x128xf32, #tpu.memory_space<vmem>>, vector<1x128xf32>
    %5 = vector.broadcast %4 : vector<1x128xf32> to vector<4x128xf32>
    %6 = arith.addf %3, %5 : vector<4x128xf32>
    %c0_5 = arith.constant 0 : index
    %c0_6 = arith.constant 0 : index
    %7 = vector.load %arg4[%c0_5, %c0_6] : memref<4x128xf32, #tpu.memory_space<vmem>>, vector<4x128xf32>
    tpu.vector_store %arg4[%c0_5, %c0_6], %6 {strides = array<i32>} : memref<4x128xf32, #tpu.memory_space<vmem>>, vector<4x128xf32>,
    return
  }
  func.func @transform_0(%arg0: i32) -> (i32, i32) {
    %c0_i32 = arith.constant 0 : i32
    %c0_i32_0 = arith.constant 0 : i32
    return %arg0, %c0_i32 : i32, i32
  }
  func.func @transform_1(%arg0: i32) -> (i32, i32) {
    %c0_i32 = arith.constant 0 : i32
    %c0_i32_0 = arith.constant 0 : i32
    %c0_i32_1 = arith.constant 0 : i32
    return %c0_i32, %c0_i32_0 : i32, i32
  }
  func.func @transform_2(%arg0: i32) -> (i32, i32) {
    %c0_i32 = arith.constant 0 : i32
    %c0_i32_0 = arith.constant 0 : i32
    %c0_i32_1 = arith.constant 0 : i32
    return %c0_i32, %c0_i32_0 : i32, i32
  }
  func.func @transform_3(%arg0: i32) -> (i32, i32) {
    %c0_i32 = arith.constant 0 : i32
    %c0_i32_0 = arith.constant 0 : i32
    return %arg0, %c0_i32 : i32, i32
  }
}

</mosaic_0001>

<llo_original>
// kernel: tile.18
$region0: #{tile.18}
  #allocation0 [shape = 's32[1]{0}', space=sflag, size = 0x4, scoped, tag = 'scoped memory for tile.18']
  %s0 = inlined_call_operand.vmem [shape: f32[32], index: 0, kind: input, shape index: {}]
  %s1 = inlined_call_operand.vmem [shape: f32[4,32], index: 1, kind: output, shape index: {}]
  // Predicated region
  $region2: #{tile.18} parent=0 // pred_check
    _
  $region3: #{tile.18} parent=0 // pred_check_branch
    %3 = sbr.rel (0) target = $region5
  $region4: #{tile.18} parent=0 // pred_region
    _
  $region5: #{tile.18} parent=0 // pred_fallthru
    _
  %v4 = vld [vmem:[%s0] ss:$0 sm:$0xff]
  %5 = vst [vmem:[%s1] sm:$0xf] %v4

// kernel: tile.19
$region0: #{tile.19}
  %s0 = inlined_call_operand.vmem [shape: f32[4,32], index: 0, kind: input, shape index: {}]
  %s1 = inlined_call_operand.vmem [shape: f32[1,128], index: 1, kind: output, shape index: {}]
  $region1: #{tile.19} parent=0
    #allocation0 [shape = 'u8[4096]{0}', space=vmem, size = 0x1000, scoped, tag = 'scoped mem for output reshape']
    #allocation1 [shape = 'u8[4096]{0}', space=vmem, size = 0x1000, scoped, tag = 'scoped mem for input reshape']
    %s3 = sshllo.u32 0, 4
    %v4 = vld [vmem:[%s0] sm:%s3]
    %5 = vst [vmem:[#allocation1] sm:%s3] %v4
    %v6 = vld [vmem:[#allocation1] sm:$0x1]
    %vm7 = vcmask 261120
    %8 = vst.msk [vmem:[#allocation0] sm:$0x1] %vm7, %v6
    %s9 = scalar_lea.vmem [#allocation1], 3
    %v10 = vld [vmem:[%s9] sm:$0x1]
    %11 = vrot.lane.b32.xlu0 %v10, 96
    %v12 = vpop.permute.xlu0 %11
    %vm13 = vcmask 1048320
    %14 = vst.msk [vmem:[#allocation0] sm:$0x1] %vm13, %v12
    %s15 = scalar_lea.vmem [#allocation1], 2
    %v16 = vld [vmem:[%s15] sm:$0x1]
    %17 = vrot.lane.b32.xlu0 %v16, 64
    %v18 = vpop.permute.xlu0 %17
    %vm19 = vcmask 785920
    %20 = vst.msk [vmem:[#allocation0] sm:$0x1] %vm19, %v18
    %s21 = scalar_lea.vmem [#allocation1], 1
    %v22 = vld [vmem:[%s21] sm:$0x1]
    %23 = vrot.lane.b32.xlu0 %v22, 32
    %v24 = vpop.permute.xlu0 %23
    %vm25 = vcmask 523520
    %26 = vst.msk [vmem:[#allocation0] sm:$0x1] %vm25, %v24
    %s28 = sshllo.u32 0, 1
    %v30 = vld [vmem:[#allocation0] sm:%s28]
    %s31 = sshllo.u32 0, 1
    %32 = vst [vmem:[%s1] sm:%s31] %v30

// kernel: normalization_forward.2
$region0: #{normalization_forward.2}
  #allocation0 [shape = 'u32[]', space=smem, size = 0x4, offset = 0x4, fixed_abs, tag = 'smem constant byte address 0x4 - core index']
  #allocation1 [shape = 'u32[144,128]{1,0:T(1,128)}', space=vmem, size = 0x12000, scoped, tag = 'internal scratch']
  %s0 = inlined_call_operand.vmem [shape: f32[4,128], index: 0, kind: input, shape index: {}]
  %s1 = inlined_call_operand.vmem [shape: f32[1,128], index: 1, kind: output, shape index: {0}]
  %s2 = inlined_call_operand.vmem [shape: f32[1,128], index: 2, kind: output, shape index: {1}]
  %3 = xla_tuple %s1, %s2
  %s4 = sld [smem:[#allocation0]]
  $region26: #{normalization_forward.2} parent=0
    _
  %s6 = ssub.s32 1, %s4
  %s7 = scalar_select 0, %s6, %s4
  // Predicated region
  $region2: #{normalization_forward.2} parent=0 // pred_check
    _
  $region3: #{normalization_forward.2} parent=0 // pred_check_branch
    %9 = sbr.rel (0) target = $region5
  $region4: #{normalization_forward.2} parent=0 // pred_region
    _
  $region5: #{normalization_forward.2} parent=0 // pred_fallthru
    _
  %p10 = scmp.eq.s32.totalorder 0, 0
  // Predicated region
  $region6: #{normalization_forward.2} parent=0 // pred_check
    %p11 = pneg %p10
  $region7: #{normalization_forward.2} parent=0 // pred_check_branch
    %13 = sbr.rel (%p11) target = $region9
  $region8: #{normalization_forward.2} parent=0 // pred_region
    %14 = vst [vmem:[%s1] sm:$0x1] 0.0
    %15 = vst [vmem:[%s2] sm:$0x1] 0.0
  $region9: #{normalization_forward.2} parent=0 // pred_fallthru
    _
  %v16 = vld [vmem:[%s0] sm:$0xf]
  %v17 = vlaneseq
  %v18 = vshrl.u32 %v17, 7
  %s19 = smul.u32 0, 4
  %v20 = vstv %s19
  %v21 = vadd.s32 %v18, %v20
  %vm22 = vcmp.lt.s32.totalorder %v21, 4
  %v23 = vsel %vm22, %v16, 0.0
  %v24 = vld [vmem:[%s1] sm:$0x1]
  %vm25 = vcmask 1043456
  %v26 = vsel %vm25, %v23, 0.0
  %v27 = vrot.slane %v26, 4
  %v28 = vadd.f32 %v26, %v27
  %v29 = vrot.slane %v28, 2
  %v30 = vadd.f32 %v28, %v29
  %v31 = vrot.slane %v30, 1
  %v32 = vadd.f32 %v30, %v31
  %v33 = vadd.f32 %v24, %v32
  %34 = vst [vmem:[%s1] sm:$0x1] %v33
  %v35 = vld [vmem:[%s2] sm:$0x1]
  %v36 = vmul.f32 %v23, %v23
  %v37 = vsel %vm25, %v36, 0.0
  %v38 = vrot.slane %v37, 4
  %v39 = vadd.f32 %v37, %v38
  %v40 = vrot.slane %v39, 2
  %v41 = vadd.f32 %v39, %v40
  %v42 = vrot.slane %v41, 1
  %v43 = vadd.f32 %v41, %v42
  %v44 = vadd.f32 %v35, %v43
  %45 = vst [vmem:[%s2] sm:$0x1] %v44
  // Predicated region
  $region10: #{normalization_forward.2} parent=0 // pred_check
    _
  $region11: #{normalization_forward.2} parent=0 // pred_check_branch
    %47 = sbr.rel (0) target = $region13
  $region12: #{normalization_forward.2} parent=0 // pred_region
    _
  $region13: #{normalization_forward.2} parent=0 // pred_fallthru
    _
  // Predicated region
  $region14: #{normalization_forward.2} parent=0 // pred_check
    _
  $region15: #{normalization_forward.2} parent=0 // pred_check_branch
    %49 = sbr.rel (0) target = $region17
  $region16: #{normalization_forward.2} parent=0 // pred_region
    _
  $region17: #{normalization_forward.2} parent=0 // pred_fallthru
    _
  // Predicated region
  $region18: #{normalization_forward.2} parent=0 // pred_check
    _
  $region19: #{normalization_forward.2} parent=0 // pred_check_branch
    %51 = sbr.rel (0) target = $region21
  $region20: #{normalization_forward.2} parent=0 // pred_region
    _
  $region21: #{normalization_forward.2} parent=0 // pred_fallthru
    _
  // Predicated region
  $region22: #{normalization_forward.2} parent=0 // pred_check
    _
  $region23: #{normalization_forward.2} parent=0 // pred_check_branch
    %53 = sbr.rel (0) target = $region25
  $region24: #{normalization_forward.2} parent=0 // pred_region
    _
  $region25: #{normalization_forward.2} parent=0 // pred_fallthru
    _

// kernel: normalization_forward.3
$region0: #{normalization_forward.3}
  #allocation0 [shape = 'u32[]', space=smem, size = 0x4, offset = 0x4, fixed_abs, tag = 'smem constant byte address 0x4 - core index']
  #allocation1 [shape = 'u32[144,128]{1,0:T(1,128)}', space=vmem, size = 0x12000, scoped, tag = 'internal scratch']
  %s0 = inlined_call_operand.vmem [shape: f32[4,128], index: 0, kind: input, shape index: {}]
  %s1 = inlined_call_operand.vmem [shape: f32[1,128], index: 1, kind: input, shape index: {}]
  %s2 = inlined_call_operand.vmem [shape: f32[1,128], index: 2, kind: input, shape index: {}]
  %s3 = inlined_call_operand.vmem [shape: f32[4,128], index: 3, kind: output, shape index: {}]
  %s4 = sld [smem:[#allocation0]]
  $region22: #{normalization_forward.3} parent=0
    _
  %s6 = ssub.s32 1, %s4
  %s7 = scalar_select 0, %s6, %s4
  // Predicated region
  $region2: #{normalization_forward.3} parent=0 // pred_check
    _
  $region3: #{normalization_forward.3} parent=0 // pred_check_branch
    %9 = sbr.rel (0) target = $region5
  $region4: #{normalization_forward.3} parent=0 // pred_region
    _
  $region5: #{normalization_forward.3} parent=0 // pred_fallthru
    _
  // Predicated region
  $region6: #{normalization_forward.3} parent=0 // pred_check
    _
  $region7: #{normalization_forward.3} parent=0 // pred_check_branch
    %11 = sbr.rel (0) target = $region9
  $region8: #{normalization_forward.3} parent=0 // pred_region
    _
  $region9: #{normalization_forward.3} parent=0 // pred_fallthru
    _
  // Predicated region
  $region10: #{normalization_forward.3} parent=0 // pred_check
    _
  $region11: #{normalization_forward.3} parent=0 // pred_check_branch
    %13 = sbr.rel (0) target = $region13
  $region12: #{normalization_forward.3} parent=0 // pred_region
    _
  $region13: #{normalization_forward.3} parent=0 // pred_fallthru
    _
  %v14 = vld [vmem:[%s0] sm:$0xf]
  %v15 = vld [vmem:[%s1] sm:$0x1]
  %v17 = vlaneseq
  %v18 = vshrl.u32 %v17, 7
  %v19 = vsub.s32 0, %v18
  %v20 = vrot.slane %v15, %v19
  %v22 = vmul.f32 %v14, %v20
  %v23 = vld [vmem:[%s2] sm:$0x1]
  %v25 = vlaneseq
  %v26 = vshrl.u32 %v25, 7
  %v27 = vsub.s32 0, %v26
  %v28 = vrot.slane %v23, %v27
  %v30 = vadd.f32 %v22, %v28
  %31 = vst [vmem:[%s3] sm:$0xf] %v30
  // Predicated region
  $region14: #{normalization_forward.3} parent=0 // pred_check
    _
  $region15: #{normalization_forward.3} parent=0 // pred_check_branch
    %33 = sbr.rel (0) target = $region17
  $region16: #{normalization_forward.3} parent=0 // pred_region
    _
  $region17: #{normalization_forward.3} parent=0 // pred_fallthru
    _
  // Predicated region
  $region18: #{normalization_forward.3} parent=0 // pred_check
    _
  $region19: #{normalization_forward.3} parent=0 // pred_check_branch
    %35 = sbr.rel (0) target = $region21
  $region20: #{normalization_forward.3} parent=0 // pred_region
    _
  $region21: #{normalization_forward.3} parent=0 // pred_fallthru
    _

</llo_original>
